<compile_context>
chip_gen: v7x
topology: tpu7x:2x2x1
jax: 0.10.0
libtpu: 0.0.40
codegen_flags: <defaults>
</compile_context>

<pallas_src>
import jax
import jax.numpy as jnp
from jax import lax
from jax.experimental import pallas as pl
from jax.experimental.pallas import tpu as pltpu


_ACTIVATIONS = {
    "Tanh": jnp.tanh,
    "Sigmoid": jax.nn.sigmoid,
    "ReLU": lambda x: jnp.maximum(x, 0.0),
    "atan": jnp.arctan,
    "LeakyReLU": lambda x: jnp.where(x >= 0, x, 0.01 * x),
}
_TRANSCENDENTAL = ("Tanh", "Sigmoid", "atan")


def _make_kernel(activation: str, act_dtype):
    act_fn = _ACTIVATIONS[activation]

    def kernel(states_ref, ctxb_ref, ws_ref, v_ref, bv_ref, o_ref):
        # states_ref: (1, tile_t, H)  native dtype (no widen: MXU is bf16-native)
        # ctxb_ref:   (1, 1, H)       f32  = context @ Wc^T + b_w  (hoisted)
        # ws_ref:     (H, H)          native dtype  = Ws^T
        # v_ref:      (1, H)          native dtype
        # bv_ref:     (1, 1)          f32
        # o_ref:      (1, 1, tile_t)  lane-dense output block
        s = states_ref[0]                                      # (tile_t, H)
        hid = jnp.dot(s, ws_ref[...],
                      preferred_element_type=jnp.float32)      # MXU, f32 accumulate
        hid = hid + ctxb_ref[0]                                # single broadcast add
        a = act_fn(hid.astype(act_dtype))                      # EUP/VPU
        # v-projection: contract H on both operands -> (1, tile_t), lane-dense.
        scores = lax.dot_general(
            v_ref[...].astype(a.dtype), a,
            dimension_numbers=(((1,), (1,)), ((), ())),
            preferred_element_type=jnp.float32)
        scores = scores + bv_ref[...]
        o_ref[0] = scores.astype(o_ref.dtype)

    return kernel


def _choose_tile_t(T, H, in_itemsize, act_itemsize, out_itemsize, budget_bytes):
    # Per T-row VMEM cost: double-buffered states + f32 hidden + activation
    # temporary + (tiny) output block.  Weights are accounted for by the caller.
    per_row = H * (2 * in_itemsize + 4 + act_itemsize) + 2 * out_itemsize
    tile = int(budget_bytes // max(per_row, 1))
    tile = min(tile, 1024)                 # diminishing returns past ~1024 rows
    if T <= 128 or tile >= T:
        return T                           # single full block along T
    return max(128, (tile // 128) * 128)   # lane-dense / (8,128)-aligned blocks


def additive_attention_score(states, context, w_weight, w_bias, v_weight, v_bias,
                             activation: str = "Tanh", tile_t: int | None = None,
                             activation_dtype=None, states_buffers: int | None = None):
    """Matches AdditiveAttentionScore.forward.

    states:   (B, T, H)
    context:  (B, H)
    w_weight: (H, 2H)  (PyTorch nn.Linear(2H, H).weight layout)
    w_bias:   (H,)
    v_weight: (1, H)   (PyTorch nn.Linear(H, 1).weight layout)
    v_bias:   (1,)
    returns:  (B, T, 1)

    activation_dtype: None -> f32 activation (reference numerics);
                      jnp.bfloat16 is an opt-in fast path for v6e/v7x.
    states_buffers:   optional pipeline depth for the states stream
                      (e.g. 3 on v5e when the kernel is HBM-bound).
    """
    B, T, H = states.shape
    out_dtype = states.dtype
    in_itemsize = jnp.dtype(states.dtype).itemsize
    out_itemsize = jnp.dtype(out_dtype).itemsize
    act_dtype = jnp.float32 if activation_dtype is None else jnp.dtype(activation_dtype)

    # --- split W; hoist the context projection (+ b_w) into the wrapper ----------
    ws_t = jnp.transpose(w_weight[:, :H])                          # (H, H) states part
    wc_t = jnp.transpose(w_weight[:, H:])                          # (H, H) context part
    ctx_b = (jnp.dot(context, wc_t, preferred_element_type=jnp.float32)
             + w_bias.astype(jnp.float32)).reshape(B, 1, H)        # (B, 1, H) f32
    v_row = v_weight.reshape(1, H)                                 # native dtype
    bv2d = v_bias.astype(jnp.float32).reshape(1, 1)

    # --- VMEM budget & tile size --------------------------------------------------
    try:
        vmem_phys = pltpu.get_tpu_info().vmem_capacity_bytes       # chip-aware (v7x=64MiB)
    except Exception:
        vmem_phys = 64 * 1024 * 1024                               # conservative default
    vmem_limit = min(int(vmem_phys * 3 // 4), 96 * 1024 * 1024)
    weight_bytes = H * H * in_itemsize
    tile_budget = max(vmem_limit // 2 - 2 * weight_bytes, 2 * 1024 * 1024)
    if tile_t is None:
        tile_t = _choose_tile_t(T, H, in_itemsize, jnp.dtype(act_dtype).itemsize,
                                out_itemsize, tile_budget)
    else:
        tile_t = T if tile_t >= T else max(128, (min(tile_t, T) // 128) * 128)
    num_t = pl.cdiv(T, tile_t)
    grid = (B, num_t)

    # --- advisory cost estimate (per-array itemsizes) ------------------------------
    flops = 2 * B * T * H * H + 2 * B * T * H
    transcendentals = B * T * H if activation in _TRANSCENDENTAL else 0
    bytes_accessed = (states.size * in_itemsize
                      + ctx_b.size * 4
                      + ws_t.size * jnp.dtype(ws_t.dtype).itemsize
                      + v_row.size * jnp.dtype(v_row.dtype).itemsize
                      + 4
                      + B * T * out_itemsize)

    kernel = _make_kernel(activation, act_dtype)

    def build(use_pipeline_mode):
        const_kw = {"pipeline_mode": pl.Buffered(1)} if use_pipeline_mode else {}
        states_kw = ({"pipeline_mode": pl.Buffered(states_buffers)}
                     if (use_pipeline_mode and states_buffers not in (None, 2)) else {})
        return pl.pallas_call(
            kernel,
            out_shape=jax.ShapeDtypeStruct((B, 1, T), out_dtype),
            grid_spec=pltpu.PrefetchScalarGridSpec(
                num_scalar_prefetch=0,
                grid=grid,
                in_specs=[
                    pl.BlockSpec((1, tile_t, H), lambda b, t: (b, t, 0), **states_kw),
                    pl.BlockSpec((1, 1, H), lambda b, t: (b, 0, 0)),       # ctx proj + b_w
                    pl.BlockSpec((H, H), lambda b, t: (0, 0), **const_kw),  # Ws^T
                    pl.BlockSpec((1, H), lambda b, t: (0, 0), **const_kw),  # v
                    pl.BlockSpec((1, 1), lambda b, t: (0, 0), **const_kw),  # b_v
                ],
                out_specs=pl.BlockSpec((1, 1, tile_t), lambda b, t: (b, 0, t)),
            ),
            compiler_params=pltpu.CompilerParams(
                dimension_semantics=("parallel", "parallel"),
                vmem_limit_bytes=vmem_limit,
            ),
            cost_estimate=pl.CostEstimate(
                flops=flops, transcendentals=transcendentals,
                bytes_accessed=bytes_accessed),
        )

    try:
        out = build(True)(states, ctx_b, ws_t, v_row, bv2d)
    except Exception:
        # pipeline_mode / Buffered(1) not supported by this jax version: fall back
        # to default double-buffering (identical results, slightly more VMEM).
        out = build(False)(states, ctx_b, ws_t, v_row, bv2d)

    return out.reshape(B, T, 1)


def _reference(states, context, w_weight, w_bias, v_weight, v_bias, activation="Tanh"):
    B, T, H = states.shape
    f32 = jnp.float32
    ctx = jnp.broadcast_to(context[:, None, :], (B, T, H)).astype(f32)
    comb = jnp.concatenate([states.astype(f32), ctx], axis=2)       # (B, T, 2H)
    hid = comb @ w_weight.astype(f32).T + w_bias.astype(f32)        # (B, T, H)
    act = _ACTIVATIONS[activation](hid)
    return act @ v_weight.astype(f32).T + v_bias.astype(f32)        # (B, T, 1)


if __name__ == "__main__":
    key = jax.random.PRNGKey(0)
    B, T, H = 2, 8, 32
    k1, k2, k3, k4, k5, k6 = jax.random.split(key, 6)

    states = jax.random.normal(k1, (B, T, H), dtype=jnp.float32)
    context = jax.random.normal(k2, (B, H), dtype=jnp.float32)
    # PyTorch nn.Linear-style parameters.
    w_weight = jax.random.normal(k3, (H, 2 * H), dtype=jnp.float32) / ((2.0 * H) ** 0.5)
    w_bias = jax.random.normal(k4, (H,), dtype=jnp.float32) * 0.1
    v_weight = jax.random.normal(k5, (1, H), dtype=jnp.float32) / (H ** 0.5)
    v_bias = jax.random.normal(k6, (1,), dtype=jnp.float32) * 0.1

    ref = _reference(states, context, w_weight, w_bias, v_weight, v_bias, "Tanh")

    # f32 path: exact vs f32 reference.
    scores = additive_attention_score(states, context, w_weight, w_bias,
                                      v_weight, v_bias, activation="Tanh")
    jax.block_until_ready(scores)
    assert scores.shape == (B, T, 1) and scores.dtype == states.dtype
    assert jnp.max(jnp.abs(scores - ref)) < 1e-4

    # bf16 path: native-dtype MXU operands with f32 accumulation (loose tolerance).
    scores_bf16 = additive_attention_score(
        states.astype(jnp.bfloat16), context.astype(jnp.bfloat16),
        w_weight.astype(jnp.bfloat16), w_bias.astype(jnp.bfloat16),
        v_weight.astype(jnp.bfloat16), v_bias.astype(jnp.bfloat16),
        activation="Tanh")
    jax.block_until_ready(scores_bf16)
    assert scores_bf16.shape == (B, T, 1) and scores_bf16.dtype == jnp.bfloat16
    diff = jnp.abs(scores_bf16.astype(jnp.float32) - ref)
    assert bool(jnp.all(jnp.isfinite(diff))) and float(jnp.max(diff)) < 0.2

    print("KERNEL_OK")
</pallas_src>

<mosaic_0001>
module attributes {stable_mosaic.version = 11 : i64} {
  func.func @kernel(%arg0: i32, %arg1: i32, %arg2: memref<1x8x32xf32, #tpu.memory_space<vmem>>, %arg3: memref<1x1x32xf32, #tpu.memory_space<vmem>>, %arg4: memref<32x32xf32, #tpu.memory_space<vmem>>, %arg5: memref<1x32xf32, #tpu.memory_space<vmem>>, %arg6: memref<1x1xf32, #tpu.memory_space<vmem>>, %arg7: memref<1x1x8xf32, #tpu.memory_space<vmem>>) attributes {dimension_semantics = [#tpu.dimension_semantics<parallel>, #tpu.dimension_semantics<parallel>], iteration_bounds = array<i64: 2, 1>, scalar_prefetch = 0 : i64, scratch_operands = 0 : i64, tpu.core_type = #tpu.core_type<tc>, window_params = [{transform_indices = @transform_0, window_bounds = array<i64: 1, 8, 32>}, {transform_indices = @transform_1, window_bounds = array<i64: 1, 1, 32>}, {pipeline_mode = #tpu.pipeline_mode<synchronous>, transform_indices = @transform_2, window_bounds = array<i64: 32, 32>}, {pipeline_mode = #tpu.pipeline_mode<synchronous>, transform_indices = @transform_3, window_bounds = array<i64: 1, 32>}, {pipeline_mode = #tpu.pipeline_mode<synchronous>, transform_indices = @transform_4, window_bounds = array<i64: 1, 1>}, {transform_indices = @transform_5, window_bounds = array<i64: 1, 1, 8>}]} {
    %c0 = arith.constant 0 : index
    %c0_0 = arith.constant 0 : index
    %c0_1 = arith.constant 0 : index
    %0 = vector.load %arg2[%c0, %c0_0, %c0_1] : memref<1x8x32xf32, #tpu.memory_space<vmem>>, vector<1x8x32xf32>
    %1 = vector.shape_cast %0 : vector<1x8x32xf32> to vector<8x32xf32>
    %c0_2 = arith.constant 0 : index
    %c0_3 = arith.constant 0 : index
    %2 = vector.load %arg4[%c0_2, %c0_3] : memref<32x32xf32, #tpu.memory_space<vmem>>, vector<32x32xf32>
    %cst = arith.constant dense<0.000000e+00> : vector<8x32xf32>
    %3 = tpu.matmul %1, %2, %cst {dimension_numbers = #tpu.dot_dimension_numbers<[1], [0], [0], [1], [0, 0, 1, 1], [], []>} : vector<8x32xf32>, vector<32x32xf32>, vector<8x32xf32> -> vector<8x32xf32>
    %c0_4 = arith.constant 0 : index
    %c0_5 = arith.constant 0 : index
    %c0_6 = arith.constant 0 : index
    %4 = vector.load %arg3[%c0_4, %c0_5, %c0_6] : memref<1x1x32xf32, #tpu.memory_space<vmem>>, vector<1x1x32xf32>
    %5 = vector.shape_cast %4 : vector<1x1x32xf32> to vector<1x32xf32>
    %6 = vector.broadcast %5 : vector<1x32xf32> to vector<8x32xf32>
    %7 = arith.addf %3, %6 : vector<8x32xf32>
    %8 = math.tanh %7 : vector<8x32xf32>
    %c0_7 = arith.constant 0 : index
    %c0_8 = arith.constant 0 : index
    %9 = vector.load %arg5[%c0_7, %c0_8] : memref<1x32xf32, #tpu.memory_space<vmem>>, vector<1x32xf32>
    %cst_9 = arith.constant dense<0.000000e+00> : vector<1x8xf32>
    %10 = tpu.matmul %9, %8, %cst_9 {dimension_numbers = #tpu.dot_dimension_numbers<[1], [1], [0], [0], [0, 0, 1, 0], [], []>} : vector<1x32xf32>, vector<8x32xf32>, vector<1x8xf32> -> vector<1x8xf32>
    %c0_10 = arith.constant 0 : index
    %c0_11 = arith.constant 0 : index
    %11 = vector.load %arg6[%c0_10, %c0_11] : memref<1x1xf32, #tpu.memory_space<vmem>>, vector<1x1xf32>
    %12 = vector.broadcast %11 : vector<1x1xf32> to vector<1x8xf32>
    %13 = arith.addf %10, %12 : vector<1x8xf32>
    %c0_12 = arith.constant 0 : index
    %c0_13 = arith.constant 0 : index
    %c0_14 = arith.constant 0 : index
    %14 = vector.load %arg7[%c0_12, %c0_13, %c0_14] : memref<1x1x8xf32, #tpu.memory_space<vmem>>, vector<1x1x8xf32>
    %15 = vector.shape_cast %14 : vector<1x1x8xf32> to vector<1x8xf32>
    %16 = vector.shape_cast %13 : vector<1x8xf32> to vector<1x1x8xf32>
    tpu.vector_store %arg7[%c0_12, %c0_13, %c0_14], %16 {strides = array<i32>} : memref<1x1x8xf32, #tpu.memory_space<vmem>>, vector<1x1x8xf32>,
    return
  }
  func.func @transform_0(%arg0: i32, %arg1: i32) -> (i32, i32, i32) {
    %c0_i32 = arith.constant 0 : i32
    %c0_i32_0 = arith.constant 0 : i32
    return %arg0, %arg1, %c0_i32 : i32, i32, i32
  }
  func.func @transform_1(%arg0: i32, %arg1: i32) -> (i32, i32, i32) {
    %c0_i32 = arith.constant 0 : i32
    %c0_i32_0 = arith.constant 0 : i32
    %c0_i32_1 = arith.constant 0 : i32
    return %arg0, %c0_i32, %c0_i32_0 : i32, i32, i32
  }
  func.func @transform_2(%arg0: i32, %arg1: i32) -> (i32, i32) {
    %c0_i32 = arith.constant 0 : i32
    %c0_i32_0 = arith.constant 0 : i32
    %c0_i32_1 = arith.constant 0 : i32
    return %c0_i32, %c0_i32_0 : i32, i32
  }
  func.func @transform_3(%arg0: i32, %arg1: i32) -> (i32, i32) {
    %c0_i32 = arith.constant 0 : i32
    %c0_i32_0 = arith.constant 0 : i32
    %c0_i32_1 = arith.constant 0 : i32
    return %c0_i32, %c0_i32_0 : i32, i32
  }
  func.func @transform_4(%arg0: i32, %arg1: i32) -> (i32, i32) {
    %c0_i32 = arith.constant 0 : i32
    %c0_i32_0 = arith.constant 0 : i32
    %c0_i32_1 = arith.constant 0 : i32
    return %c0_i32, %c0_i32_0 : i32, i32
  }
  func.func @transform_5(%arg0: i32, %arg1: i32) -> (i32, i32, i32) {
    %c0_i32 = arith.constant 0 : i32
    %c0_i32_0 = arith.constant 0 : i32
    return %arg0, %c0_i32, %arg1 : i32, i32, i32
  }
}

module attributes {stable_mosaic.version = 11 : i64} {
  func.func @kernel(%arg0: i32, %arg1: i32, %arg2: memref<1x8x32xf32, #tpu.memory_space<vmem>>, %arg3: memref<1x1x32xf32, #tpu.memory_space<vmem>>, %arg4: memref<32x32xf32, #tpu.memory_space<vmem>>, %arg5: memref<1x32xf32, #tpu.memory_space<vmem>>, %arg6: memref<1x1xf32, #tpu.memory_space<vmem>>, %arg7: memref<1x1x8xf32, #tpu.memory_space<vmem>>) attributes {dimension_semantics = [#tpu.dimension_semantics<parallel>, #tpu.dimension_semantics<parallel>], iteration_bounds = array<i64: 2, 1>, scalar_prefetch = 0 : i64, scratch_operands = 0 : i64, tpu.core_type = #tpu.core_type<tc>, window_params = [{transform_indices = @transform_0, window_bounds = array<i64: 1, 8, 32>}, {transform_indices = @transform_1, window_bounds = array<i64: 1, 1, 32>}, {pipeline_mode = #tpu.pipeline_mode<synchronous>, transform_indices = @transform_2, window_bounds = array<i64: 32, 32>}, {pipeline_mode = #tpu.pipeline_mode<synchronous>, transform_indices = @transform_3, window_bounds = array<i64: 1, 32>}, {pipeline_mode = #tpu.pipeline_mode<synchronous>, transform_indices = @transform_4, window_bounds = array<i64: 1, 1>}, {transform_indices = @transform_5, window_bounds = array<i64: 1, 1, 8>}]} {
    %c0 = arith.constant 0 : index
    %c0_0 = arith.constant 0 : index
    %c0_1 = arith.constant 0 : index
    %0 = vector.load %arg2[%c0, %c0_0, %c0_1] : memref<1x8x32xf32, #tpu.memory_space<vmem>>, vector<1x8x32xf32>
    %1 = vector.shape_cast %0 : vector<1x8x32xf32> to vector<8x32xf32>
    %c0_2 = arith.constant 0 : index
    %c0_3 = arith.constant 0 : index
    %2 = vector.load %arg4[%c0_2, %c0_3] : memref<32x32xf32, #tpu.memory_space<vmem>>, vector<32x32xf32>
    %cst = arith.constant dense<0.000000e+00> : vector<8x32xf32>
    %3 = tpu.matmul %1, %2, %cst {dimension_numbers = #tpu.dot_dimension_numbers<[1], [0], [0], [1], [0, 0, 1, 1], [], []>} : vector<8x32xf32>, vector<32x32xf32>, vector<8x32xf32> -> vector<8x32xf32>
    %c0_4 = arith.constant 0 : index
    %c0_5 = arith.constant 0 : index
    %c0_6 = arith.constant 0 : index
    %4 = vector.load %arg3[%c0_4, %c0_5, %c0_6] : memref<1x1x32xf32, #tpu.memory_space<vmem>>, vector<1x1x32xf32>
    %5 = vector.shape_cast %4 : vector<1x1x32xf32> to vector<1x32xf32>
    %6 = vector.broadcast %5 : vector<1x32xf32> to vector<8x32xf32>
    %7 = arith.addf %3, %6 : vector<8x32xf32>
    %8 = math.tanh %7 : vector<8x32xf32>
    %c0_7 = arith.constant 0 : index
    %c0_8 = arith.constant 0 : index
    %9 = vector.load %arg5[%c0_7, %c0_8] : memref<1x32xf32, #tpu.memory_space<vmem>>, vector<1x32xf32>
    %cst_9 = arith.constant dense<0.000000e+00> : vector<1x8xf32>
    %10 = tpu.matmul %9, %8, %cst_9 {dimension_numbers = #tpu.dot_dimension_numbers<[1], [1], [0], [0], [0, 0, 1, 0], [], []>} : vector<1x32xf32>, vector<8x32xf32>, vector<1x8xf32> -> vector<1x8xf32>
    %c0_10 = arith.constant 0 : index
    %c0_11 = arith.constant 0 : index
    %11 = vector.load %arg6[%c0_10, %c0_11] : memref<1x1xf32, #tpu.memory_space<vmem>>, vector<1x1xf32>
    %12 = vector.broadcast %11 : vector<1x1xf32> to vector<1x8xf32>
    %13 = arith.addf %10, %12 : vector<1x8xf32>
    %c0_12 = arith.constant 0 : index
    %c0_13 = arith.constant 0 : index
    %c0_14 = arith.constant 0 : index
    %14 = vector.load %arg7[%c0_12, %c0_13, %c0_14] : memref<1x1x8xf32, #tpu.memory_space<vmem>>, vector<1x1x8xf32>
    %15 = vector.shape_cast %14 : vector<1x1x8xf32> to vector<1x8xf32>
    %16 = vector.shape_cast %13 : vector<1x8xf32> to vector<1x1x8xf32>
    tpu.vector_store %arg7[%c0_12, %c0_13, %c0_14], %16 {strides = array<i32>} : memref<1x1x8xf32, #tpu.memory_space<vmem>>, vector<1x1x8xf32>,
    return
  }
  func.func @transform_0(%arg0: i32, %arg1: i32) -> (i32, i32, i32) {
    %c0_i32 = arith.constant 0 : i32
    %c0_i32_0 = arith.constant 0 : i32
    return %arg0, %arg1, %c0_i32 : i32, i32, i32
  }
  func.func @transform_1(%arg0: i32, %arg1: i32) -> (i32, i32, i32) {
    %c0_i32 = arith.constant 0 : i32
    %c0_i32_0 = arith.constant 0 : i32
    %c0_i32_1 = arith.constant 0 : i32
    return %arg0, %c0_i32, %c0_i32_0 : i32, i32, i32
  }
  func.func @transform_2(%arg0: i32, %arg1: i32) -> (i32, i32) {
    %c0_i32 = arith.constant 0 : i32
    %c0_i32_0 = arith.constant 0 : i32
    %c0_i32_1 = arith.constant 0 : i32
    return %c0_i32, %c0_i32_0 : i32, i32
  }
  func.func @transform_3(%arg0: i32, %arg1: i32) -> (i32, i32) {
    %c0_i32 = arith.constant 0 : i32
    %c0_i32_0 = arith.constant 0 : i32
    %c0_i32_1 = arith.constant 0 : i32
    return %c0_i32, %c0_i32_0 : i32, i32
  }
  func.func @transform_4(%arg0: i32, %arg1: i32) -> (i32, i32) {
    %c0_i32 = arith.constant 0 : i32
    %c0_i32_0 = arith.constant 0 : i32
    %c0_i32_1 = arith.constant 0 : i32
    return %c0_i32, %c0_i32_0 : i32, i32
  }
  func.func @transform_5(%arg0: i32, %arg1: i32) -> (i32, i32, i32) {
    %c0_i32 = arith.constant 0 : i32
    %c0_i32_0 = arith.constant 0 : i32
    return %arg0, %c0_i32, %arg1 : i32, i32, i32
  }
}

</mosaic_0001>

<llo_original>
// kernel: tpu_custom_call.1
$region0: #{tpu_custom_call.1}
  #allocation0 [shape = 'u32[]', space=smem, size = 0x4, offset = 0x4, fixed_abs, tag = 'smem constant byte address 0x4 - core index']
  #allocation1 [shape = 'u32[144,128]{1,0:T(1,128)}', space=vmem, size = 0x12000, scoped, tag = 'internal scratch']
  #allocation2 [shape = 'f32[1,1]{1,0:T(1,128)S(1)}', space=vmem, size = 0x200, scoped, tag = 'scoped memory for tpu_custom_call.1']
  %s0 = inlined_call_operand.hbm [shape: f32[2,8,32], index: 0, kind: input, shape index: {}]
  %s1 = inlined_call_operand.vmem [shape: f32[2,1,32], index: 1, kind: input, shape index: {}]
  %s2 = inlined_call_operand.hbm [shape: f32[32,32], index: 2, kind: input, shape index: {}]
  %s3 = inlined_call_operand.vmem [shape: f32[1,32], index: 3, kind: input, shape index: {}]
  %s4 = inlined_call_operand.<no memory space> [shape: f32[1,1], index: 4, kind: input, shape index: {}]
  %s5 = inlined_call_operand.hbm [shape: f32[2,1,8], index: 5, kind: output, shape index: {}]
  %s6 = sld [smem:[#allocation0]]
  $region61: #{tpu_custom_call.1} parent=0
    _
  %s8 = ssub.s32 1, %s6
  %s9 = scalar_select 0, %s8, %s6
  %v10 = vstv %s4
  %11 = vst [vmem:[#allocation2] sm:$0x1] %v10
  $region1: #{tpu_custom_call.1} parent=0
    #allocation3 [shape = 'u8[8192]{0}', space=vmem, size = 0x2000, scoped, tag = 'input window, operand 0']
    #allocation4 [shape = 's32[2]{0}', space=sflag, size = 0x8, scoped, tag = 'scoped memory for tpu_custom_call.1']
    #allocation5 [shape = 's32[2]{0}', space=sflag, size = 0x8, scoped, tag = 'scoped memory for tpu_custom_call.1']
    #allocation6 [shape = 'u8[16384]{0}', space=vmem, size = 0x4000, scoped, tag = 'input window, operand 2, single buffered']
    #allocation7 [shape = 's32[1]{0}', space=sflag, size = 0x4, scoped, tag = 'scoped memory for tpu_custom_call.1']
    #allocation8 [shape = 'u8[1024]{0}', space=vmem, size = 0x400, scoped, tag = 'output window, operand 0']
    %12 = vsyncpa [#allocation4], 0
    %s13 = scalar_lea.sflag [#allocation4], 1
    %14 = vsyncpa %s13, 0
    %15 = vsyncpa [#allocation7], 0
    %16 = vsyncpa [#allocation5], 0
    %s17 = scalar_lea.sflag [#allocation5], 1
    %18 = vsyncpa %s17, 0
    loop: start=0, step=1, limit=4
    $region2: #{tpu_custom_call.1} parent=1 // loop_pre_header
      _
    $region3: #{tpu_custom_call.1} parent=1 // loop_header
      %s20 = sphi 0, %s24
      %p21 = scmp.ge.s32.totalorder %s20, 4
      %s27 = sphi 0, %s39
      %s28 = sphi 0, %s35
      %s29 = sphi 0, %s27
      %s30 = sphi 0, %s28
      %s31 = sphi 0, %s29
      %s32 = sphi 0, %s30
      %s44 = sphi 0, %s46
      %s47 = sphi 0, %s44
      %s48 = sphi 0, %s47
      %s64 = sphi 0, %s48
      %s70 = sphi 0, %s72
      %s73 = sphi 0, %s70
      %s74 = sphi 0, %s73
      %s90 = sphi 0, %s74
      %s94 = sphi 0, %s94
      %s96 = sphi 0, %s94
      %s97 = sphi 0, %s96
      %s111 = sphi 0, %s97
      %s115 = sphi 0, %s115
      %s117 = sphi 0, %s115
      %s118 = sphi 0, %s117
      %s132 = sphi 0, %s118
      %s136 = sphi 0, %s136
      %s138 = sphi 0, %s136
      %s139 = sphi 0, %s138
      %s153 = sphi 0, %s139
      %s161 = sphi 0, %s163
      %s164 = sphi 0, %s161
      %s165 = sphi 0, %s164
      %s181 = sphi 0, %s165
    $region4: #{tpu_custom_call.1} parent=1 // loop_header_branch
      %23 = sbr.rel (%p21) target = $region8
    $region5: #{tpu_custom_call.1} parent=1 // loop_body
      %s25 = ssub.s32 %s20, 1
      %s26 = ssub.s32 %s20, 2
      %s33 = sadd.s32 1, %s28
      %p34 = scmp.ge.s32.totalorder %s33, 1
      %s35 = scalar_select %p34, 0, %s33
      %s36 = sadd.s32 1, %s27
      %s37 = scalar_select %p34, %s36, %s27
      %p38 = scmp.ge.s32.totalorder %s37, 2
      %s39 = scalar_select %p38, 0, %s37
      %s40 = ssub.s32 %s27, %s39
      %s41 = ssub.s32 %s28, %s35
      %s42 = sor.u32 %s40, %s41
      %p43 = scmp.eq.s32.totalorder %s42, 0
      %s45 = sadd.s32 %s44, 1
      %s46 = scalar_select %p43, %s44, %s45
      %p49 = pneg %p43
      %p50 = scmp.eq.s32.totalorder %s20, 1
      %p51 = por %p49, %p50
      %p52 = scmp.ne.s32.totalorder %s44, %s47
      %p53 = scmp.eq.s32.totalorder %s20, 0
      %p54 = por %p52, %p53
      %p55 = scmp.ne.s32.totalorder %s44, %s47
      %p56 = scmp.eq.s32.totalorder %s25, 1
      %p57 = por %p55, %p56
      %p58 = scmp.ne.s32.totalorder %s47, %s48
      %p59 = scmp.eq.s32.totalorder %s25, 0
      %p60 = por %p58, %p59
      %p61 = scmp.ne.s32.totalorder %s47, %s48
      %p62 = scmp.eq.s32.totalorder %s26, 1
      %p63 = por %p61, %p62
      %p65 = scmp.ne.s32.totalorder %s48, %s64
      %p66 = scmp.eq.s32.totalorder %s26, 0
      %p67 = por %p65, %p66
      %s68 = ssub.s32 %s27, %s39
      %p69 = scmp.eq.s32.totalorder %s68, 0
      %s71 = sadd.s32 %s70, 1
      %s72 = scalar_select %p69, %s70, %s71
      %p75 = pneg %p69
      %p76 = scmp.eq.s32.totalorder %s20, 1
      %p77 = por %p75, %p76
      %p78 = scmp.ne.s32.totalorder %s70, %s73
      %p79 = scmp.eq.s32.totalorder %s20, 0
      %p80 = por %p78, %p79
      %p81 = scmp.ne.s32.totalorder %s70, %s73
      %p82 = scmp.eq.s32.totalorder %s25, 1
      %p83 = por %p81, %p82
      %p84 = scmp.ne.s32.totalorder %s73, %s74
      %p85 = scmp.eq.s32.totalorder %s25, 0
      %p86 = por %p84, %p85
      %p87 = scmp.ne.s32.totalorder %s73, %s74
      %p88 = scmp.eq.s32.totalorder %s26, 1
      %p89 = por %p87, %p88
      %p91 = scmp.ne.s32.totalorder %s74, %s90
      %p92 = scmp.eq.s32.totalorder %s26, 0
      %p93 = por %p91, %p92
      %s95 = sadd.s32 %s94, 1
      %p98 = scmp.eq.s32.totalorder %s20, 1
      %p99 = scmp.ne.s32.totalorder %s94, %s96
      %p100 = scmp.eq.s32.totalorder %s20, 0
      %p101 = por %p99, %p100
      %p102 = scmp.ne.s32.totalorder %s94, %s96
      %p103 = scmp.eq.s32.totalorder %s25, 1
      %p104 = por %p102, %p103
      %p105 = scmp.ne.s32.totalorder %s96, %s97
      %p106 = scmp.eq.s32.totalorder %s25, 0
      %p107 = por %p105, %p106
      %p108 = scmp.ne.s32.totalorder %s96, %s97
      %p109 = scmp.eq.s32.totalorder %s26, 1
      %p110 = por %p108, %p109
      %p112 = scmp.ne.s32.totalorder %s97, %s111
      %p113 = scmp.eq.s32.totalorder %s26, 0
      %p114 = por %p112, %p113
      %s116 = sadd.s32 %s115, 1
      %p119 = scmp.eq.s32.totalorder %s20, 1
      %p120 = scmp.ne.s32.totalorder %s115, %s117
      %p121 = scmp.eq.s32.totalorder %s20, 0
      %p122 = por %p120, %p121
      %p123 = scmp.ne.s32.totalorder %s115, %s117
      %p124 = scmp.eq.s32.totalorder %s25, 1
      %p125 = por %p123, %p124
      %p126 = scmp.ne.s32.totalorder %s117, %s118
      %p127 = scmp.eq.s32.totalorder %s25, 0
      %p128 = por %p126, %p127
      %p129 = scmp.ne.s32.totalorder %s117, %s118
      %p130 = scmp.eq.s32.totalorder %s26, 1
      %p131 = por %p129, %p130
      %p133 = scmp.ne.s32.totalorder %s118, %s132
      %p134 = scmp.eq.s32.totalorder %s26, 0
      %p135 = por %p133, %p134
      %s137 = sadd.s32 %s136, 1
      %p140 = scmp.eq.s32.totalorder %s20, 1
      %p141 = scmp.ne.s32.totalorder %s136, %s138
      %p142 = scmp.eq.s32.totalorder %s20, 0
      %p143 = por %p141, %p142
      %p144 = scmp.ne.s32.totalorder %s136, %s138
      %p145 = scmp.eq.s32.totalorder %s25, 1
      %p146 = por %p144, %p145
      %p147 = scmp.ne.s32.totalorder %s138, %s139
      %p148 = scmp.eq.s32.totalorder %s25, 0
      %p149 = por %p147, %p148
      %p150 = scmp.ne.s32.totalorder %s138, %s139
      %p151 = scmp.eq.s32.totalorder %s26, 1
      %p152 = por %p150, %p151
      %p154 = scmp.ne.s32.totalorder %s139, %s153
      %p155 = scmp.eq.s32.totalorder %s26, 0
      %p156 = por %p154, %p155
      %s157 = ssub.s32 %s27, %s39
      %s158 = ssub.s32 %s28, %s35
      %s159 = sor.u32 %s157, %s158
      %p160 = scmp.eq.s32.totalorder %s159, 0
      %s162 = sadd.s32 %s161, 1
      %s163 = scalar_select %p160, %s161, %s162
      %p166 = pneg %p160
      %p167 = scmp.eq.s32.totalorder %s20, 1
      %p168 = por %p166, %p167
      %p169 = scmp.ne.s32.totalorder %s161, %s164
      %p170 = scmp.eq.s32.totalorder %s20, 0
      %p171 = por %p169, %p170
      %p172 = scmp.ne.s32.totalorder %s161, %s164
      %p173 = scmp.eq.s32.totalorder %s25, 1
      %p174 = por %p172, %p173
      %p175 = scmp.ne.s32.totalorder %s164, %s165
      %p176 = scmp.eq.s32.totalorder %s25, 0
      %p177 = por %p175, %p176
      %p178 = scmp.ne.s32.totalorder %s164, %s165
      %p179 = scmp.eq.s32.totalorder %s26, 1
      %p180 = por %p178, %p179
      %p182 = scmp.ne.s32.totalorder %s165, %s181
      %p183 = scmp.eq.s32.totalorder %s26, 0
      %p184 = por %p182, %p183
      %p185 = scmp.le.s32.totalorder 1, %s20
      %p186 = scmp.lt.s32.totalorder %s20, 3
      %p187 = pnand %p185, %p186
      %p188 = pneg %p187
      // Predicated region
      $region9: #{tpu_custom_call.1} parent=5 // pred_check
        _
      $region10: #{tpu_custom_call.1} parent=5 // pred_check_branch
        %190 = sbr.rel (%p187) target = $region12
      $region11: #{tpu_custom_call.1} parent=5 // pred_region
        %s191 = ssub.s32 %s20, 1
        // Predicated region
        $region13: #{tpu_custom_call.1} parent=11 // pred_check
          %p192 = pneg %p107
        $region14: #{tpu_custom_call.1} parent=11 // pred_check_branch
          %194 = sbr.rel (%p192) target = $region16
        $region15: #{tpu_custom_call.1} parent=11 // pred_region
          %s196 = ssub.s32 512, 512
          %197 = vsyncadd [#allocation7], %s196
          %s198 = sshll.u32 [#allocation6], 4
          %s199 = int_to_ptr.vmem [resolvable:$true] %s198
          %204 = dma.hbm_to_vmem [thread:$0]  %s2, 512, %s199, [#allocation7], 128, 128, 8
        $region16: #{tpu_custom_call.1} parent=11 // pred_fallthru
          _
        // Predicated region
        $region17: #{tpu_custom_call.1} parent=11 // pred_check
          %p205 = pneg %p128
        $region18: #{tpu_custom_call.1} parent=11 // pred_check_branch
          %207 = sbr.rel (%p205) target = $region20
        $region19: #{tpu_custom_call.1} parent=11 // pred_region
          _
        $region20: #{tpu_custom_call.1} parent=11 // pred_fallthru
          _
        // Predicated region
        $region21: #{tpu_custom_call.1} parent=11 // pred_check
          %p208 = pneg %p149
        $region22: #{tpu_custom_call.1} parent=11 // pred_check_branch
          %210 = sbr.rel (%p208) target = $region24
        $region23: #{tpu_custom_call.1} parent=11 // pred_region
          _
        $region24: #{tpu_custom_call.1} parent=11 // pred_fallthru
          _
      $region12: #{tpu_custom_call.1} parent=5 // pred_fallthru
        _
      %p211 = scmp.lt.s32.totalorder %s20, 2
      // Predicated region
      $region25: #{tpu_custom_call.1} parent=5 // pred_check
        %p212 = pneg %p211
      $region26: #{tpu_custom_call.1} parent=5 // pred_check_branch
        %214 = sbr.rel (%p212) target = $region28
      $region27: #{tpu_custom_call.1} parent=5 // pred_region
        // Predicated region
        $region29: #{tpu_custom_call.1} parent=27 // pred_check
          %p215 = pneg %p54
        $region30: #{tpu_custom_call.1} parent=27 // pred_check_branch
          %217 = sbr.rel (%p215) target = $region32
        $region31: #{tpu_custom_call.1} parent=27 // pred_region
          %s218 = sand.u32 %s44, 1
          %s219 = scalar_lea.sflag [#allocation4], %s218
          %s220 = sand.u32 %s44, 1
          %s221 = smul.addr %s220, 8
          %s222 = scalar_lea.vmem [#allocation3], %s221
          %s224 = ssub.s32 128, 128
          %225 = vsyncadd %s219, %s224
          %s226 = sadd.s32 %s28, %s27
          %s227 = smul.addr %s226, 128
          %s228 = scalar_lea.hbm %s0, %s227
          %s230 = sshll.u32 %s222, 4
          %s231 = int_to_ptr.vmem [resolvable:$true] %s230
          %233 = dma.hbm_to_vmem [thread:$0]  %s228, 128, %s231, %s219
        $region32: #{tpu_custom_call.1} parent=27 // pred_fallthru
          _
        // Predicated region
        $region33: #{tpu_custom_call.1} parent=27 // pred_check
          %p234 = pneg %p80
        $region34: #{tpu_custom_call.1} parent=27 // pred_check_branch
          %236 = sbr.rel (%p234) target = $region36
        $region35: #{tpu_custom_call.1} parent=27 // pred_region
          %p237 = scmp.lt.s32.totalorder %s27, 1
          %s238 = scalar_select %p237, %s27, 1
          %s239 = scalar_lea.vmem %s1, %s238
        $region36: #{tpu_custom_call.1} parent=27 // pred_fallthru
          _
      $region28: #{tpu_custom_call.1} parent=5 // pred_fallthru
        _
      %p240 = scmp.le.s32.totalorder 1, %s20
      %p241 = scmp.lt.s32.totalorder %s20, 3
      %p242 = pnand %p240, %p241
      %p243 = pneg %p242
      // Predicated region
      $region37: #{tpu_custom_call.1} parent=5 // pred_check
        _
      $region38: #{tpu_custom_call.1} parent=5 // pred_check_branch
        %245 = sbr.rel (%p242) target = $region40
      $region39: #{tpu_custom_call.1} parent=5 // pred_region
        %s246 = ssub.s32 %s20, 1
        %s247 = sand.u32 %s47, 1
        %s248 = scalar_lea.sflag [#allocation4], %s247
        %s249 = sand.u32 %s47, 1
        %s250 = smul.addr %s249, 8
        %s251 = scalar_lea.vmem [#allocation3], %s250
        // Predicated region
        $region41: #{tpu_custom_call.1} parent=39 // pred_check
          %p252 = pneg %p60
        $region42: #{tpu_custom_call.1} parent=39 // pred_check_branch
          %254 = sbr.rel (%p252) target = $region44
        $region43: #{tpu_custom_call.1} parent=39 // pred_region
          %255 = dma.done %s248, 128
        $region44: #{tpu_custom_call.1} parent=39 // pred_fallthru
          _
        // Predicated region
        $region45: #{tpu_custom_call.1} parent=39 // pred_check
          %p256 = pneg %p107
        $region46: #{tpu_custom_call.1} parent=39 // pred_check_branch
          %258 = sbr.rel (%p256) target = $region48
        $region47: #{tpu_custom_call.1} parent=39 // pred_region
          %259 = dma.done [#allocation7], 512
        $region48: #{tpu_custom_call.1} parent=39 // pred_fallthru
          _
        %s260 = sand.u32 %s47, 1
        %s261 = scalar_lea.sflag [#allocation4], %s260
        %s262 = sand.u32 %s47, 1
        %s263 = smul.addr %s262, 8
        %s264 = scalar_lea.vmem [#allocation3], %s263
        %p265 = pneg %p60
        %p266 = pneg %p57
        %p267 = scmp.lt.s32.totalorder %s29, 1
        %s268 = scalar_select %p267, %s29, 1
        %s269 = scalar_lea.vmem %s1, %s268
        %p270 = pneg %p86
        %p271 = pneg %p83
        %p272 = pneg %p107
        %p273 = pneg %p104
        %p274 = pneg %p128
        %p275 = pneg %p125
        %p276 = pneg %p149
        %p277 = pneg %p146
        %p278 = pneg %p177
        %p279 = pneg %p174
        %s280 = sand.u32 %s164, 1
        %s281 = scalar_lea.sflag [#allocation5], %s280
        %s282 = sand.u32 %s164, 1
        %s283 = scalar_lea.vmem [#allocation8], %s282
        %p284 = scmp.lt.s32.totalorder %s29, 1
        %s285 = scalar_select %p284, %s29, 1
        %s286 = scalar_lea.vmem %s1, %s285
        %v287 = vld [vmem:[%s251] sm:$0xff]
        %v288 = vld [vmem:[#allocation6] sm:$0xff]
        %v289 = vld [vmem:[#allocation6 + $0x8] sm:$0xff]
        %v290 = vld [vmem:[#allocation6 + $0x10] sm:$0xff]
        %v291 = vld [vmem:[#allocation6 + $0x18] sm:$0xff]
        %v292 = vld [vmem:[%s286] sm:$0x1]
        %v294 = vlaneseq
        %v295 = vshrl.u32 %v294, 7
        %v296 = vsub.s32 0, %v295
        %v297 = vrot.slane %v292, %v296
        %vm299 = vcmask 261120
        %v301 = vsel %vm299, %v287, 0
        %303 = vmatprep.subr.mxu0 0.0
        %304 = vmatpush1.msra.mxu0 %v288
        %305 = vmatprep.subr.mxu0 0.0
        %306 = vmatpush1.msra.mxu0 %v289
        %307 = vmatprep.subr.mxu0 0.0
        %308 = vmatpush1.msra.mxu0 %v290
        %309 = vmatprep.subr.mxu0 0.0
        %310 = vmatpush1.msra.mxu0 %v291
        %311 = vmatprep.subr.mxu0 0.0
        %312 = vmatpush1.msra.mxu0 0.0
        %313 = vmatprep.subr.mxu0 0.0
        %314 = vmatpush1.msra.mxu0 0.0
        %315 = vmatprep.subr.mxu0 0.0
        %316 = vmatpush1.msra.mxu0 0.0
        %317 = vmatprep.subr.mxu0 0.0
        %318 = vmatpush1.msra.mxu0 0.0
        %319 = vmatprep.subr.mxu0 0.0
        %320 = vmatpush1.msra.mxu0 0.0
        %321 = vmatprep.subr.mxu0 0.0
        %322 = vmatpush1.msra.mxu0 0.0
        %323 = vmatprep.subr.mxu0 0.0
        %324 = vmatpush1.msra.mxu0 0.0
        %325 = vmatprep.subr.mxu0 0.0
        %326 = vmatpush1.msra.mxu0 0.0
        %327 = vmatprep.subr.mxu0 0.0
        %328 = vmatpush1.msra.mxu0 0.0
        %329 = vmatprep.subr.mxu0 0.0
        %330 = vmatpush1.msra.mxu0 0.0
        %331 = vmatprep.subr.mxu0 0.0
        %332 = vmatpush1.msra.mxu0 0.0
        %333 = vmatprep.subr.mxu0 0.0
        %334 = vmatpush1.msra.mxu0 0.0
        %335 = vmatprep.subr.mxu0 0.0
        %336 = vmatpush1.msra.mxu0 0.0
        %337 = vmatprep.subr.mxu0 0.0
        %338 = vmatpush1.msra.mxu0 0.0
        %339 = vmatprep.subr.mxu0 0.0
        %340 = vmatpush1.msra.mxu0 0.0
        %341 = vmatprep.subr.mxu0 0.0
        %342 = vmatpush1.msra.mxu0 0.0
        %343 = vmatprep.subr.mxu0 0.0
        %344 = vmatpush1.msra.mxu0 0.0
        %345 = vmatprep.subr.mxu0 0.0
        %346 = vmatpush1.msra.mxu0 0.0
        %347 = vmatprep.subr.mxu0 0.0
        %348 = vmatpush1.msra.mxu0 0.0
        %349 = vmatprep.subr.mxu0 0.0
        %350 = vmatpush1.msra.mxu0 0.0
        %351 = vmatprep.subr.mxu0 0.0
        %352 = vmatpush1.msra.mxu0 0.0
        %353 = vmatprep.subr.mxu0 0.0
        %354 = vmatpush1.msra.mxu0 0.0
        %355 = vmatprep.subr.mxu0 0.0
        %356 = vmatpush1.msra.mxu0 0.0
        %357 = vmatprep.subr.mxu0 0.0
        %358 = vmatpush1.msra.mxu0 0.0
        %359 = vmatprep.subr.mxu0 0.0
        %360 = vmatpush1.msra.mxu0 0.0
        %361 = vmatprep.subr.mxu0 0.0
        %362 = vmatpush1.msra.mxu0 0.0
        %363 = vmatprep.subr.mxu0 0.0
        %364 = vmatpush1.msra.mxu0 0.0
        %365 = vmatprep.subr.mxu0 0.0
        %366 = vmatpush1.msra.mxu0 0.0
        %367 = vmatprep.mubr.f32.mxu0 0.0
        %368 = vmatmul.mubr.f32.gmra.mrb[0].mxu0 %v301
        %v369 = vpop.f32.mrb[0].mxu0
        %v370 = vadd.f32 %v297, %v369
        %v371 = vpop.f32.mrb[0].mxu0
        %372 = vdwg.mxu0
        %v373 = vtanh.pop %v370
        %v374 = vld [vmem:[%s3] sm:$0x1]
        %v375 = vld [vmem:[#allocation2] sm:$0x1]
        %377 = vset.pattern.permute.xlu0 0
        %378 = vperm.xlu0 %377, %v375
        %v379 = vpop.permute.xlu0 %378
        %v381 = vlaneseq
        %v382 = vshrl.u32 %v381, 7
        %v383 = vsub.s32 0, %v382
        %v384 = vrot.slane %v379, %v383
        %v386 = vsel %vm299, %v374, 0
        %v389 = vsel %vm299, %v373, 0
        %391 = vmatprep.subr.mxu0 0.0
        %392 = vmatpush1.xpose.msra.mxu0 %v389
        %393 = vmatprep.subr.mxu0 0.0
        %394 = vmatpush1.xpose.msra.mxu0 0.0
        %395 = vmatprep.subr.mxu0 0.0
        %396 = vmatpush1.xpose.msra.mxu0 0.0
        %397 = vmatprep.subr.mxu0 0.0
        %398 = vmatpush1.xpose.msra.mxu0 0.0
        %399 = vmatprep.subr.mxu0 0.0
        %400 = vmatpush1.xpose.msra.mxu0 0.0
        %401 = vmatprep.subr.mxu0 0.0
        %402 = vmatpush1.xpose.msra.mxu0 0.0
        %403 = vmatprep.subr.mxu0 0.0
        %404 = vmatpush1.xpose.msra.mxu0 0.0
        %405 = vmatprep.subr.mxu0 0.0
        %406 = vmatpush1.xpose.msra.mxu0 0.0
        %407 = vmatprep.subr.mxu0 0.0
        %408 = vmatpush1.xpose.msra.mxu0 0.0
        %409 = vmatprep.subr.mxu0 0.0
        %410 = vmatpush1.xpose.msra.mxu0 0.0
        %411 = vmatprep.subr.mxu0 0.0
        %412 = vmatpush1.xpose.msra.mxu0 0.0
        %413 = vmatprep.subr.mxu0 0.0
        %414 = vmatpush1.xpose.msra.mxu0 0.0
        %415 = vmatprep.subr.mxu0 0.0
        %416 = vmatpush1.xpose.msra.mxu0 0.0
        %417 = vmatprep.subr.mxu0 0.0
        %418 = vmatpush1.xpose.msra.mxu0 0.0
        %419 = vmatprep.subr.mxu0 0.0
        %420 = vmatpush1.xpose.msra.mxu0 0.0
        %421 = vmatprep.subr.mxu0 0.0
        %422 = vmatpush1.xpose.msra.mxu0 0.0
        %423 = vmatprep.subr.mxu0 0.0
        %424 = vmatpush1.xpose.msra.mxu0 0.0
        %425 = vmatprep.subr.mxu0 0.0
        %426 = vmatpush1.xpose.msra.mxu0 0.0
        %427 = vmatprep.subr.mxu0 0.0
        %428 = vmatpush1.xpose.msra.mxu0 0.0
        %429 = vmatprep.subr.mxu0 0.0
        %430 = vmatpush1.xpose.msra.mxu0 0.0
        %431 = vmatprep.subr.mxu0 0.0
        %432 = vmatpush1.xpose.msra.mxu0 0.0
        %433 = vmatprep.subr.mxu0 0.0
        %434 = vmatpush1.xpose.msra.mxu0 0.0
        %435 = vmatprep.subr.mxu0 0.0
        %436 = vmatpush1.xpose.msra.mxu0 0.0
        %437 = vmatprep.subr.mxu0 0.0
        %438 = vmatpush1.xpose.msra.mxu0 0.0
        %439 = vmatprep.subr.mxu0 0.0
        %440 = vmatpush1.xpose.msra.mxu0 0.0
        %441 = vmatprep.subr.mxu0 0.0
        %442 = vmatpush1.xpose.msra.mxu0 0.0
        %443 = vmatprep.subr.mxu0 0.0
        %444 = vmatpush1.xpose.msra.mxu0 0.0
        %445 = vmatprep.subr.mxu0 0.0
        %446 = vmatpush1.xpose.msra.mxu0 0.0
        %447 = vmatprep.subr.mxu0 0.0
        %448 = vmatpush1.xpose.msra.mxu0 0.0
        %449 = vmatprep.subr.mxu0 0.0
        %450 = vmatpush1.xpose.msra.mxu0 0.0
        %451 = vmatprep.subr.mxu0 0.0
        %452 = vmatpush1.xpose.msra.mxu0 0.0
        %453 = vmatprep.subr.mxu0 0.0
        %454 = vmatpush1.xpose.msra.mxu0 0.0
        %455 = vmatprep.mubr.f32.mxu0 0.0
        %456 = vmatmul.mubr.f32.gmra.mrb[0].mxu0 %v386
        %v457 = vpop.f32.mrb[0].mxu0
        %v458 = vadd.f32 %v384, %v457
        %v459 = vpop.f32.mrb[0].mxu0
        %460 = vdwg.mxu0
        %vm461 = vcmask 57344
        %462 = vst.msk [vmem:[%s283] sm:$0x1] %vm461, %v458
        %s463 = sand.u32 %s164, 1
        %s464 = scalar_lea.sflag [#allocation5], %s463
        %s465 = sand.u32 %s164, 1
        %s466 = scalar_lea.vmem [#allocation8], %s465
        // Predicated region
        $region49: #{tpu_custom_call.1} parent=39 // pred_check
          %p467 = pneg %p174
        $region50: #{tpu_custom_call.1} parent=39 // pred_check_branch
          %469 = sbr.rel (%p467) target = $region52
        $region51: #{tpu_custom_call.1} parent=39 // pred_region
          %s471 = ssub.s32 16, 16
          %472 = vsyncadd %s464, %s471
          %s473 = sadd.s32 %s30, %s29
          %s474 = smul.addr %s473, 16
          %s475 = scalar_lea.hbm %s5, %s474
          %s477 = sshll.u32 %s466, 4
          %s478 = int_to_ptr.vmem [resolvable:$true] %s477
          %480 = dma.vmem_to_hbm [thread:$0]  %s478, 16, %s475, %s464
        $region52: #{tpu_custom_call.1} parent=39 // pred_fallthru
          _
      $region40: #{tpu_custom_call.1} parent=5 // pred_fallthru
        _
      %p481 = scmp.le.s32.totalorder 2, %s20
      // Predicated region
      $region53: #{tpu_custom_call.1} parent=5 // pred_check
        %p482 = pneg %p481
      $region54: #{tpu_custom_call.1} parent=5 // pred_check_branch
        %484 = sbr.rel (%p482) target = $region56
      $region55: #{tpu_custom_call.1} parent=5 // pred_region
        %s485 = ssub.s32 %s20, 2
        // Predicated region
        $region57: #{tpu_custom_call.1} parent=55 // pred_check
          %p486 = pneg %p180
        $region58: #{tpu_custom_call.1} parent=55 // pred_check_branch
          %488 = sbr.rel (%p486) target = $region60
        $region59: #{tpu_custom_call.1} parent=55 // pred_region
          %s489 = sand.u32 %s165, 1
          %s490 = scalar_lea.sflag [#allocation5], %s489
          %s491 = sand.u32 %s165, 1
          %s492 = scalar_lea.vmem [#allocation8], %s491
          %493 = dma.done %s490, 16
        $region60: #{tpu_custom_call.1} parent=55 // pred_fallthru
          _
      $region56: #{tpu_custom_call.1} parent=5 // pred_fallthru
        _
    $region6: #{tpu_custom_call.1} parent=1 // loop_footer
      %s24 = sadd.s32 1, %s20
    $region7: #{tpu_custom_call.1} parent=1 // loop_footer_branch
      %19 = sbr.rel target = $region3
    $region8: #{tpu_custom_call.1} parent=1 // loop_exit
      _
    %494 = vsyncpa [#allocation4], 1
    %s495 = scalar_lea.sflag [#allocation4], 1
    %496 = vsyncpa %s495, 1
    %497 = vsyncpa [#allocation7], 1
    %498 = vsyncpa [#allocation5], 1
    %s499 = scalar_lea.sflag [#allocation5], 1
    %500 = vsyncpa %s499, 1

// kernel: tpu_custom_call.1
$region0: #{tpu_custom_call.1}
  #allocation0 [shape = 'u32[]', space=smem, size = 0x4, offset = 0x4, fixed_abs, tag = 'smem constant byte address 0x4 - core index']
  #allocation1 [shape = 'u32[144,128]{1,0:T(1,128)}', space=vmem, size = 0x12000, scoped, tag = 'internal scratch']
  #allocation2 [shape = 'f32[1,1]{1,0:T(1,128)S(1)}', space=vmem, size = 0x200, scoped, tag = 'scoped memory for tpu_custom_call.1']
  %s0 = inlined_call_operand.hbm [shape: f32[2,8,32], index: 0, kind: input, shape index: {}]
  %s1 = inlined_call_operand.vmem [shape: f32[2,1,32], index: 1, kind: input, shape index: {}]
  %s2 = inlined_call_operand.hbm [shape: f32[32,32], index: 2, kind: input, shape index: {}]
  %s3 = inlined_call_operand.vmem [shape: f32[1,32], index: 3, kind: input, shape index: {}]
  %s4 = inlined_call_operand.<no memory space> [shape: f32[1,1], index: 4, kind: input, shape index: {}]
  %s5 = inlined_call_operand.hbm [shape: f32[2,1,8], index: 5, kind: output, shape index: {}]
  %s6 = sld [smem:[#allocation0]]
  $region61: #{tpu_custom_call.1} parent=0
    _
  %s8 = ssub.s32 1, %s6
  %s9 = scalar_select 0, %s8, %s6
  %v10 = vstv %s4
  %11 = vst [vmem:[#allocation2] sm:$0x1] %v10
  $region1: #{tpu_custom_call.1} parent=0
    #allocation3 [shape = 'u8[8192]{0}', space=vmem, size = 0x2000, scoped, tag = 'input window, operand 0']
    #allocation4 [shape = 's32[2]{0}', space=sflag, size = 0x8, scoped, tag = 'scoped memory for tpu_custom_call.1']
    #allocation5 [shape = 's32[2]{0}', space=sflag, size = 0x8, scoped, tag = 'scoped memory for tpu_custom_call.1']
    #allocation6 [shape = 'u8[16384]{0}', space=vmem, size = 0x4000, scoped, tag = 'input window, operand 2, single buffered']
    #allocation7 [shape = 's32[1]{0}', space=sflag, size = 0x4, scoped, tag = 'scoped memory for tpu_custom_call.1']
    #allocation8 [shape = 'u8[1024]{0}', space=vmem, size = 0x400, scoped, tag = 'output window, operand 0']
    %12 = vsyncpa [#allocation4], 0
    %s13 = scalar_lea.sflag [#allocation4], 1
    %14 = vsyncpa %s13, 0
    %15 = vsyncpa [#allocation7], 0
    %16 = vsyncpa [#allocation5], 0
    %s17 = scalar_lea.sflag [#allocation5], 1
    %18 = vsyncpa %s17, 0
    loop: start=0, step=1, limit=4
    $region2: #{tpu_custom_call.1} parent=1 // loop_pre_header
      _
    $region3: #{tpu_custom_call.1} parent=1 // loop_header
      %s20 = sphi 0, %s24
      %p21 = scmp.ge.s32.totalorder %s20, 4
      %s27 = sphi 0, %s39
      %s28 = sphi 0, %s35
      %s29 = sphi 0, %s27
      %s30 = sphi 0, %s28
      %s31 = sphi 0, %s29
      %s32 = sphi 0, %s30
      %s44 = sphi 0, %s46
      %s47 = sphi 0, %s44
      %s48 = sphi 0, %s47
      %s64 = sphi 0, %s48
      %s70 = sphi 0, %s72
      %s73 = sphi 0, %s70
      %s74 = sphi 0, %s73
      %s90 = sphi 0, %s74
      %s94 = sphi 0, %s94
      %s96 = sphi 0, %s94
      %s97 = sphi 0, %s96
      %s111 = sphi 0, %s97
      %s115 = sphi 0, %s115
      %s117 = sphi 0, %s115
      %s118 = sphi 0, %s117
      %s132 = sphi 0, %s118
      %s136 = sphi 0, %s136
      %s138 = sphi 0, %s136
      %s139 = sphi 0, %s138
      %s153 = sphi 0, %s139
      %s161 = sphi 0, %s163
      %s164 = sphi 0, %s161
      %s165 = sphi 0, %s164
      %s181 = sphi 0, %s165
    $region4: #{tpu_custom_call.1} parent=1 // loop_header_branch
      %23 = sbr.rel (%p21) target = $region8
    $region5: #{tpu_custom_call.1} parent=1 // loop_body
      %s25 = ssub.s32 %s20, 1
      %s26 = ssub.s32 %s20, 2
      %s33 = sadd.s32 1, %s28
      %p34 = scmp.ge.s32.totalorder %s33, 1
      %s35 = scalar_select %p34, 0, %s33
      %s36 = sadd.s32 1, %s27
      %s37 = scalar_select %p34, %s36, %s27
      %p38 = scmp.ge.s32.totalorder %s37, 2
      %s39 = scalar_select %p38, 0, %s37
      %s40 = ssub.s32 %s27, %s39
      %s41 = ssub.s32 %s28, %s35
      %s42 = sor.u32 %s40, %s41
      %p43 = scmp.eq.s32.totalorder %s42, 0
      %s45 = sadd.s32 %s44, 1
      %s46 = scalar_select %p43, %s44, %s45
      %p49 = pneg %p43
      %p50 = scmp.eq.s32.totalorder %s20, 1
      %p51 = por %p49, %p50
      %p52 = scmp.ne.s32.totalorder %s44, %s47
      %p53 = scmp.eq.s32.totalorder %s20, 0
      %p54 = por %p52, %p53
      %p55 = scmp.ne.s32.totalorder %s44, %s47
      %p56 = scmp.eq.s32.totalorder %s25, 1
      %p57 = por %p55, %p56
      %p58 = scmp.ne.s32.totalorder %s47, %s48
      %p59 = scmp.eq.s32.totalorder %s25, 0
      %p60 = por %p58, %p59
      %p61 = scmp.ne.s32.totalorder %s47, %s48
      %p62 = scmp.eq.s32.totalorder %s26, 1
      %p63 = por %p61, %p62
      %p65 = scmp.ne.s32.totalorder %s48, %s64
      %p66 = scmp.eq.s32.totalorder %s26, 0
      %p67 = por %p65, %p66
      %s68 = ssub.s32 %s27, %s39
      %p69 = scmp.eq.s32.totalorder %s68, 0
      %s71 = sadd.s32 %s70, 1
      %s72 = scalar_select %p69, %s70, %s71
      %p75 = pneg %p69
      %p76 = scmp.eq.s32.totalorder %s20, 1
      %p77 = por %p75, %p76
      %p78 = scmp.ne.s32.totalorder %s70, %s73
      %p79 = scmp.eq.s32.totalorder %s20, 0
      %p80 = por %p78, %p79
      %p81 = scmp.ne.s32.totalorder %s70, %s73
      %p82 = scmp.eq.s32.totalorder %s25, 1
      %p83 = por %p81, %p82
      %p84 = scmp.ne.s32.totalorder %s73, %s74
      %p85 = scmp.eq.s32.totalorder %s25, 0
      %p86 = por %p84, %p85
      %p87 = scmp.ne.s32.totalorder %s73, %s74
      %p88 = scmp.eq.s32.totalorder %s26, 1
      %p89 = por %p87, %p88
      %p91 = scmp.ne.s32.totalorder %s74, %s90
      %p92 = scmp.eq.s32.totalorder %s26, 0
      %p93 = por %p91, %p92
      %s95 = sadd.s32 %s94, 1
      %p98 = scmp.eq.s32.totalorder %s20, 1
      %p99 = scmp.ne.s32.totalorder %s94, %s96
      %p100 = scmp.eq.s32.totalorder %s20, 0
      %p101 = por %p99, %p100
      %p102 = scmp.ne.s32.totalorder %s94, %s96
      %p103 = scmp.eq.s32.totalorder %s25, 1
      %p104 = por %p102, %p103
      %p105 = scmp.ne.s32.totalorder %s96, %s97
      %p106 = scmp.eq.s32.totalorder %s25, 0
      %p107 = por %p105, %p106
      %p108 = scmp.ne.s32.totalorder %s96, %s97
      %p109 = scmp.eq.s32.totalorder %s26, 1
      %p110 = por %p108, %p109
      %p112 = scmp.ne.s32.totalorder %s97, %s111
      %p113 = scmp.eq.s32.totalorder %s26, 0
      %p114 = por %p112, %p113
      %s116 = sadd.s32 %s115, 1
      %p119 = scmp.eq.s32.totalorder %s20, 1
      %p120 = scmp.ne.s32.totalorder %s115, %s117
      %p121 = scmp.eq.s32.totalorder %s20, 0
      %p122 = por %p120, %p121
      %p123 = scmp.ne.s32.totalorder %s115, %s117
      %p124 = scmp.eq.s32.totalorder %s25, 1
      %p125 = por %p123, %p124
      %p126 = scmp.ne.s32.totalorder %s117, %s118
      %p127 = scmp.eq.s32.totalorder %s25, 0
      %p128 = por %p126, %p127
      %p129 = scmp.ne.s32.totalorder %s117, %s118
      %p130 = scmp.eq.s32.totalorder %s26, 1
      %p131 = por %p129, %p130
      %p133 = scmp.ne.s32.totalorder %s118, %s132
      %p134 = scmp.eq.s32.totalorder %s26, 0
      %p135 = por %p133, %p134
      %s137 = sadd.s32 %s136, 1
      %p140 = scmp.eq.s32.totalorder %s20, 1
      %p141 = scmp.ne.s32.totalorder %s136, %s138
      %p142 = scmp.eq.s32.totalorder %s20, 0
      %p143 = por %p141, %p142
      %p144 = scmp.ne.s32.totalorder %s136, %s138
      %p145 = scmp.eq.s32.totalorder %s25, 1
      %p146 = por %p144, %p145
      %p147 = scmp.ne.s32.totalorder %s138, %s139
      %p148 = scmp.eq.s32.totalorder %s25, 0
      %p149 = por %p147, %p148
      %p150 = scmp.ne.s32.totalorder %s138, %s139
      %p151 = scmp.eq.s32.totalorder %s26, 1
      %p152 = por %p150, %p151
      %p154 = scmp.ne.s32.totalorder %s139, %s153
      %p155 = scmp.eq.s32.totalorder %s26, 0
      %p156 = por %p154, %p155
      %s157 = ssub.s32 %s27, %s39
      %s158 = ssub.s32 %s28, %s35
      %s159 = sor.u32 %s157, %s158
      %p160 = scmp.eq.s32.totalorder %s159, 0
      %s162 = sadd.s32 %s161, 1
      %s163 = scalar_select %p160, %s161, %s162
      %p166 = pneg %p160
      %p167 = scmp.eq.s32.totalorder %s20, 1
      %p168 = por %p166, %p167
      %p169 = scmp.ne.s32.totalorder %s161, %s164
      %p170 = scmp.eq.s32.totalorder %s20, 0
      %p171 = por %p169, %p170
      %p172 = scmp.ne.s32.totalorder %s161, %s164
      %p173 = scmp.eq.s32.totalorder %s25, 1
      %p174 = por %p172, %p173
      %p175 = scmp.ne.s32.totalorder %s164, %s165
      %p176 = scmp.eq.s32.totalorder %s25, 0
      %p177 = por %p175, %p176
      %p178 = scmp.ne.s32.totalorder %s164, %s165
      %p179 = scmp.eq.s32.totalorder %s26, 1
      %p180 = por %p178, %p179
      %p182 = scmp.ne.s32.totalorder %s165, %s181
      %p183 = scmp.eq.s32.totalorder %s26, 0
      %p184 = por %p182, %p183
      %p185 = scmp.le.s32.totalorder 1, %s20
      %p186 = scmp.lt.s32.totalorder %s20, 3
      %p187 = pnand %p185, %p186
      %p188 = pneg %p187
      // Predicated region
      $region9: #{tpu_custom_call.1} parent=5 // pred_check
        _
      $region10: #{tpu_custom_call.1} parent=5 // pred_check_branch
        %190 = sbr.rel (%p187) target = $region12
      $region11: #{tpu_custom_call.1} parent=5 // pred_region
        %s191 = ssub.s32 %s20, 1
        // Predicated region
        $region13: #{tpu_custom_call.1} parent=11 // pred_check
          %p192 = pneg %p107
        $region14: #{tpu_custom_call.1} parent=11 // pred_check_branch
          %194 = sbr.rel (%p192) target = $region16
        $region15: #{tpu_custom_call.1} parent=11 // pred_region
          %s196 = ssub.s32 512, 512
          %197 = vsyncadd [#allocation7], %s196
          %s198 = sshll.u32 [#allocation6], 4
          %s199 = int_to_ptr.vmem [resolvable:$true] %s198
          %204 = dma.hbm_to_vmem [thread:$0]  %s2, 512, %s199, [#allocation7], 128, 128, 8
        $region16: #{tpu_custom_call.1} parent=11 // pred_fallthru
          _
        // Predicated region
        $region17: #{tpu_custom_call.1} parent=11 // pred_check
          %p205 = pneg %p128
        $region18: #{tpu_custom_call.1} parent=11 // pred_check_branch
          %207 = sbr.rel (%p205) target = $region20
        $region19: #{tpu_custom_call.1} parent=11 // pred_region
          _
        $region20: #{tpu_custom_call.1} parent=11 // pred_fallthru
          _
        // Predicated region
        $region21: #{tpu_custom_call.1} parent=11 // pred_check
          %p208 = pneg %p149
        $region22: #{tpu_custom_call.1} parent=11 // pred_check_branch
          %210 = sbr.rel (%p208) target = $region24
        $region23: #{tpu_custom_call.1} parent=11 // pred_region
          _
        $region24: #{tpu_custom_call.1} parent=11 // pred_fallthru
          _
      $region12: #{tpu_custom_call.1} parent=5 // pred_fallthru
        _
      %p211 = scmp.lt.s32.totalorder %s20, 2
      // Predicated region
      $region25: #{tpu_custom_call.1} parent=5 // pred_check
        %p212 = pneg %p211
      $region26: #{tpu_custom_call.1} parent=5 // pred_check_branch
        %214 = sbr.rel (%p212) target = $region28
      $region27: #{tpu_custom_call.1} parent=5 // pred_region
        // Predicated region
        $region29: #{tpu_custom_call.1} parent=27 // pred_check
          %p215 = pneg %p54
        $region30: #{tpu_custom_call.1} parent=27 // pred_check_branch
          %217 = sbr.rel (%p215) target = $region32
        $region31: #{tpu_custom_call.1} parent=27 // pred_region
          %s218 = sand.u32 %s44, 1
          %s219 = scalar_lea.sflag [#allocation4], %s218
          %s220 = sand.u32 %s44, 1
          %s221 = smul.addr %s220, 8
          %s222 = scalar_lea.vmem [#allocation3], %s221
          %s224 = ssub.s32 128, 128
          %225 = vsyncadd %s219, %s224
          %s226 = sadd.s32 %s28, %s27
          %s227 = smul.addr %s226, 128
          %s228 = scalar_lea.hbm %s0, %s227
          %s230 = sshll.u32 %s222, 4
          %s231 = int_to_ptr.vmem [resolvable:$true] %s230
          %233 = dma.hbm_to_vmem [thread:$0]  %s228, 128, %s231, %s219
        $region32: #{tpu_custom_call.1} parent=27 // pred_fallthru
          _
        // Predicated region
        $region33: #{tpu_custom_call.1} parent=27 // pred_check
          %p234 = pneg %p80
        $region34: #{tpu_custom_call.1} parent=27 // pred_check_branch
          %236 = sbr.rel (%p234) target = $region36
        $region35: #{tpu_custom_call.1} parent=27 // pred_region
          %p237 = scmp.lt.s32.totalorder %s27, 1
          %s238 = scalar_select %p237, %s27, 1
          %s239 = scalar_lea.vmem %s1, %s238
        $region36: #{tpu_custom_call.1} parent=27 // pred_fallthru
          _
      $region28: #{tpu_custom_call.1} parent=5 // pred_fallthru
        _
      %p240 = scmp.le.s32.totalorder 1, %s20
      %p241 = scmp.lt.s32.totalorder %s20, 3
      %p242 = pnand %p240, %p241
      %p243 = pneg %p242
      // Predicated region
      $region37: #{tpu_custom_call.1} parent=5 // pred_check
        _
      $region38: #{tpu_custom_call.1} parent=5 // pred_check_branch
        %245 = sbr.rel (%p242) target = $region40
      $region39: #{tpu_custom_call.1} parent=5 // pred_region
        %s246 = ssub.s32 %s20, 1
        %s247 = sand.u32 %s47, 1
        %s248 = scalar_lea.sflag [#allocation4], %s247
        %s249 = sand.u32 %s47, 1
        %s250 = smul.addr %s249, 8
        %s251 = scalar_lea.vmem [#allocation3], %s250
        // Predicated region
        $region41: #{tpu_custom_call.1} parent=39 // pred_check
          %p252 = pneg %p60
        $region42: #{tpu_custom_call.1} parent=39 // pred_check_branch
          %254 = sbr.rel (%p252) target = $region44
        $region43: #{tpu_custom_call.1} parent=39 // pred_region
          %255 = dma.done %s248, 128
        $region44: #{tpu_custom_call.1} parent=39 // pred_fallthru
          _
        // Predicated region
        $region45: #{tpu_custom_call.1} parent=39 // pred_check
          %p256 = pneg %p107
        $region46: #{tpu_custom_call.1} parent=39 // pred_check_branch
          %258 = sbr.rel (%p256) target = $region48
        $region47: #{tpu_custom_call.1} parent=39 // pred_region
          %259 = dma.done [#allocation7], 512
        $region48: #{tpu_custom_call.1} parent=39 // pred_fallthru
          _
        %s260 = sand.u32 %s47, 1
        %s261 = scalar_lea.sflag [#allocation4], %s260
        %s262 = sand.u32 %s47, 1
        %s263 = smul.addr %s262, 8
        %s264 = scalar_lea.vmem [#allocation3], %s263
        %p265 = pneg %p60
        %p266 = pneg %p57
        %p267 = scmp.lt.s32.totalorder %s29, 1
        %s268 = scalar_select %p267, %s29, 1
        %s269 = scalar_lea.vmem %s1, %s268
        %p270 = pneg %p86
        %p271 = pneg %p83
        %p272 = pneg %p107
        %p273 = pneg %p104
        %p274 = pneg %p128
        %p275 = pneg %p125
        %p276 = pneg %p149
        %p277 = pneg %p146
        %p278 = pneg %p177
        %p279 = pneg %p174
        %s280 = sand.u32 %s164, 1
        %s281 = scalar_lea.sflag [#allocation5], %s280
        %s282 = sand.u32 %s164, 1
        %s283 = scalar_lea.vmem [#allocation8], %s282
        %p284 = scmp.lt.s32.totalorder %s29, 1
        %s285 = scalar_select %p284, %s29, 1
        %s286 = scalar_lea.vmem %s1, %s285
        %v287 = vld [vmem:[%s251] sm:$0xff]
        %v288 = vld [vmem:[#allocation6] sm:$0xff]
        %v289 = vld [vmem:[#allocation6 + $0x8] sm:$0xff]
        %v290 = vld [vmem:[#allocation6 + $0x10] sm:$0xff]
        %v291 = vld [vmem:[#allocation6 + $0x18] sm:$0xff]
        %v292 = vld [vmem:[%s286] sm:$0x1]
        %v294 = vlaneseq
        %v295 = vshrl.u32 %v294, 7
        %v296 = vsub.s32 0, %v295
        %v297 = vrot.slane %v292, %v296
        %vm299 = vcmask 261120
        %v301 = vsel %vm299, %v287, 0
        %303 = vmatprep.subr.mxu0 0.0
        %304 = vmatpush1.msra.mxu0 %v288
        %305 = vmatprep.subr.mxu0 0.0
        %306 = vmatpush1.msra.mxu0 %v289
        %307 = vmatprep.subr.mxu0 0.0
        %308 = vmatpush1.msra.mxu0 %v290
        %309 = vmatprep.subr.mxu0 0.0
        %310 = vmatpush1.msra.mxu0 %v291
        %311 = vmatprep.subr.mxu0 0.0
        %312 = vmatpush1.msra.mxu0 0.0
        %313 = vmatprep.subr.mxu0 0.0
        %314 = vmatpush1.msra.mxu0 0.0
        %315 = vmatprep.subr.mxu0 0.0
        %316 = vmatpush1.msra.mxu0 0.0
        %317 = vmatprep.subr.mxu0 0.0
        %318 = vmatpush1.msra.mxu0 0.0
        %319 = vmatprep.subr.mxu0 0.0
        %320 = vmatpush1.msra.mxu0 0.0
        %321 = vmatprep.subr.mxu0 0.0
        %322 = vmatpush1.msra.mxu0 0.0
        %323 = vmatprep.subr.mxu0 0.0
        %324 = vmatpush1.msra.mxu0 0.0
        %325 = vmatprep.subr.mxu0 0.0
        %326 = vmatpush1.msra.mxu0 0.0
        %327 = vmatprep.subr.mxu0 0.0
        %328 = vmatpush1.msra.mxu0 0.0
        %329 = vmatprep.subr.mxu0 0.0
        %330 = vmatpush1.msra.mxu0 0.0
        %331 = vmatprep.subr.mxu0 0.0
        %332 = vmatpush1.msra.mxu0 0.0
        %333 = vmatprep.subr.mxu0 0.0
        %334 = vmatpush1.msra.mxu0 0.0
        %335 = vmatprep.subr.mxu0 0.0
        %336 = vmatpush1.msra.mxu0 0.0
        %337 = vmatprep.subr.mxu0 0.0
        %338 = vmatpush1.msra.mxu0 0.0
        %339 = vmatprep.subr.mxu0 0.0
        %340 = vmatpush1.msra.mxu0 0.0
        %341 = vmatprep.subr.mxu0 0.0
        %342 = vmatpush1.msra.mxu0 0.0
        %343 = vmatprep.subr.mxu0 0.0
        %344 = vmatpush1.msra.mxu0 0.0
        %345 = vmatprep.subr.mxu0 0.0
        %346 = vmatpush1.msra.mxu0 0.0
        %347 = vmatprep.subr.mxu0 0.0
        %348 = vmatpush1.msra.mxu0 0.0
        %349 = vmatprep.subr.mxu0 0.0
        %350 = vmatpush1.msra.mxu0 0.0
        %351 = vmatprep.subr.mxu0 0.0
        %352 = vmatpush1.msra.mxu0 0.0
        %353 = vmatprep.subr.mxu0 0.0
        %354 = vmatpush1.msra.mxu0 0.0
        %355 = vmatprep.subr.mxu0 0.0
        %356 = vmatpush1.msra.mxu0 0.0
        %357 = vmatprep.subr.mxu0 0.0
        %358 = vmatpush1.msra.mxu0 0.0
        %359 = vmatprep.subr.mxu0 0.0
        %360 = vmatpush1.msra.mxu0 0.0
        %361 = vmatprep.subr.mxu0 0.0
        %362 = vmatpush1.msra.mxu0 0.0
        %363 = vmatprep.subr.mxu0 0.0
        %364 = vmatpush1.msra.mxu0 0.0
        %365 = vmatprep.subr.mxu0 0.0
        %366 = vmatpush1.msra.mxu0 0.0
        %367 = vmatprep.mubr.f32.mxu0 0.0
        %368 = vmatmul.mubr.f32.gmra.mrb[0].mxu0 %v301
        %v369 = vpop.f32.mrb[0].mxu0
        %v370 = vadd.f32 %v297, %v369
        %v371 = vpop.f32.mrb[0].mxu0
        %372 = vdwg.mxu0
        %v373 = vtanh.pop %v370
        %v374 = vld [vmem:[%s3] sm:$0x1]
        %v375 = vld [vmem:[#allocation2] sm:$0x1]
        %377 = vset.pattern.permute.xlu0 0
        %378 = vperm.xlu0 %377, %v375
        %v379 = vpop.permute.xlu0 %378
        %v381 = vlaneseq
        %v382 = vshrl.u32 %v381, 7
        %v383 = vsub.s32 0, %v382
        %v384 = vrot.slane %v379, %v383
        %v386 = vsel %vm299, %v374, 0
        %v389 = vsel %vm299, %v373, 0
        %391 = vmatprep.subr.mxu0 0.0
        %392 = vmatpush1.xpose.msra.mxu0 %v389
        %393 = vmatprep.subr.mxu0 0.0
        %394 = vmatpush1.xpose.msra.mxu0 0.0
        %395 = vmatprep.subr.mxu0 0.0
        %396 = vmatpush1.xpose.msra.mxu0 0.0
        %397 = vmatprep.subr.mxu0 0.0
        %398 = vmatpush1.xpose.msra.mxu0 0.0
        %399 = vmatprep.subr.mxu0 0.0
        %400 = vmatpush1.xpose.msra.mxu0 0.0
        %401 = vmatprep.subr.mxu0 0.0
        %402 = vmatpush1.xpose.msra.mxu0 0.0
        %403 = vmatprep.subr.mxu0 0.0
        %404 = vmatpush1.xpose.msra.mxu0 0.0
        %405 = vmatprep.subr.mxu0 0.0
        %406 = vmatpush1.xpose.msra.mxu0 0.0
        %407 = vmatprep.subr.mxu0 0.0
        %408 = vmatpush1.xpose.msra.mxu0 0.0
        %409 = vmatprep.subr.mxu0 0.0
        %410 = vmatpush1.xpose.msra.mxu0 0.0
        %411 = vmatprep.subr.mxu0 0.0
        %412 = vmatpush1.xpose.msra.mxu0 0.0
        %413 = vmatprep.subr.mxu0 0.0
        %414 = vmatpush1.xpose.msra.mxu0 0.0
        %415 = vmatprep.subr.mxu0 0.0
        %416 = vmatpush1.xpose.msra.mxu0 0.0
        %417 = vmatprep.subr.mxu0 0.0
        %418 = vmatpush1.xpose.msra.mxu0 0.0
        %419 = vmatprep.subr.mxu0 0.0
        %420 = vmatpush1.xpose.msra.mxu0 0.0
        %421 = vmatprep.subr.mxu0 0.0
        %422 = vmatpush1.xpose.msra.mxu0 0.0
        %423 = vmatprep.subr.mxu0 0.0
        %424 = vmatpush1.xpose.msra.mxu0 0.0
        %425 = vmatprep.subr.mxu0 0.0
        %426 = vmatpush1.xpose.msra.mxu0 0.0
        %427 = vmatprep.subr.mxu0 0.0
        %428 = vmatpush1.xpose.msra.mxu0 0.0
        %429 = vmatprep.subr.mxu0 0.0
        %430 = vmatpush1.xpose.msra.mxu0 0.0
        %431 = vmatprep.subr.mxu0 0.0
        %432 = vmatpush1.xpose.msra.mxu0 0.0
        %433 = vmatprep.subr.mxu0 0.0
        %434 = vmatpush1.xpose.msra.mxu0 0.0
        %435 = vmatprep.subr.mxu0 0.0
        %436 = vmatpush1.xpose.msra.mxu0 0.0
        %437 = vmatprep.subr.mxu0 0.0
        %438 = vmatpush1.xpose.msra.mxu0 0.0
        %439 = vmatprep.subr.mxu0 0.0
        %440 = vmatpush1.xpose.msra.mxu0 0.0
        %441 = vmatprep.subr.mxu0 0.0
        %442 = vmatpush1.xpose.msra.mxu0 0.0
        %443 = vmatprep.subr.mxu0 0.0
        %444 = vmatpush1.xpose.msra.mxu0 0.0
        %445 = vmatprep.subr.mxu0 0.0
        %446 = vmatpush1.xpose.msra.mxu0 0.0
        %447 = vmatprep.subr.mxu0 0.0
        %448 = vmatpush1.xpose.msra.mxu0 0.0
        %449 = vmatprep.subr.mxu0 0.0
        %450 = vmatpush1.xpose.msra.mxu0 0.0
        %451 = vmatprep.subr.mxu0 0.0
        %452 = vmatpush1.xpose.msra.mxu0 0.0
        %453 = vmatprep.subr.mxu0 0.0
        %454 = vmatpush1.xpose.msra.mxu0 0.0
        %455 = vmatprep.mubr.f32.mxu0 0.0
        %456 = vmatmul.mubr.f32.gmra.mrb[0].mxu0 %v386
        %v457 = vpop.f32.mrb[0].mxu0
        %v458 = vadd.f32 %v384, %v457
        %v459 = vpop.f32.mrb[0].mxu0
        %460 = vdwg.mxu0
        %vm461 = vcmask 57344
        %462 = vst.msk [vmem:[%s283] sm:$0x1] %vm461, %v458
        %s463 = sand.u32 %s164, 1
        %s464 = scalar_lea.sflag [#allocation5], %s463
        %s465 = sand.u32 %s164, 1
        %s466 = scalar_lea.vmem [#allocation8], %s465
        // Predicated region
        $region49: #{tpu_custom_call.1} parent=39 // pred_check
          %p467 = pneg %p174
        $region50: #{tpu_custom_call.1} parent=39 // pred_check_branch
          %469 = sbr.rel (%p467) target = $region52
        $region51: #{tpu_custom_call.1} parent=39 // pred_region
          %s471 = ssub.s32 16, 16
          %472 = vsyncadd %s464, %s471
          %s473 = sadd.s32 %s30, %s29
          %s474 = smul.addr %s473, 16
          %s475 = scalar_lea.hbm %s5, %s474
          %s477 = sshll.u32 %s466, 4
          %s478 = int_to_ptr.vmem [resolvable:$true] %s477
          %480 = dma.vmem_to_hbm [thread:$0]  %s478, 16, %s475, %s464
        $region52: #{tpu_custom_call.1} parent=39 // pred_fallthru
          _
      $region40: #{tpu_custom_call.1} parent=5 // pred_fallthru
        _
      %p481 = scmp.le.s32.totalorder 2, %s20
      // Predicated region
      $region53: #{tpu_custom_call.1} parent=5 // pred_check
        %p482 = pneg %p481
      $region54: #{tpu_custom_call.1} parent=5 // pred_check_branch
        %484 = sbr.rel (%p482) target = $region56
      $region55: #{tpu_custom_call.1} parent=5 // pred_region
        %s485 = ssub.s32 %s20, 2
        // Predicated region
        $region57: #{tpu_custom_call.1} parent=55 // pred_check
          %p486 = pneg %p180
        $region58: #{tpu_custom_call.1} parent=55 // pred_check_branch
          %488 = sbr.rel (%p486) target = $region60
        $region59: #{tpu_custom_call.1} parent=55 // pred_region
          %s489 = sand.u32 %s165, 1
          %s490 = scalar_lea.sflag [#allocation5], %s489
          %s491 = sand.u32 %s165, 1
          %s492 = scalar_lea.vmem [#allocation8], %s491
          %493 = dma.done %s490, 16
        $region60: #{tpu_custom_call.1} parent=55 // pred_fallthru
          _
      $region56: #{tpu_custom_call.1} parent=5 // pred_fallthru
        _
    $region6: #{tpu_custom_call.1} parent=1 // loop_footer
      %s24 = sadd.s32 1, %s20
    $region7: #{tpu_custom_call.1} parent=1 // loop_footer_branch
      %19 = sbr.rel target = $region3
    $region8: #{tpu_custom_call.1} parent=1 // loop_exit
      _
    %494 = vsyncpa [#allocation4], 1
    %s495 = scalar_lea.sflag [#allocation4], 1
    %496 = vsyncpa %s495, 1
    %497 = vsyncpa [#allocation7], 1
    %498 = vsyncpa [#allocation5], 1
    %s499 = scalar_lea.sflag [#allocation5], 1
    %500 = vsyncpa %s499, 1

</llo_original>
